<compile_context>
chip_gen: v7x
topology: tpu7x:2x2x1
jax: 0.10.0
libtpu: 0.0.40
codegen_flags: <defaults>
</compile_context>

<pallas_src>
import functools
import math

import jax
import jax.numpy as jnp
import numpy as np
from jax import lax
from jax.experimental import pallas as pl
from jax.experimental.pallas import tpu as pltpu


def _round_up(x, m):
    return ((x + m - 1) // m) * m


# ----------------------------- Pallas kernels -----------------------------

def _gdconv_global_kernel(x_ref, w_ref, s_ref, b_ref, o_ref):
    """Global depthwise conv (kernel == spatial, pad 0) + folded BN.

    x: (bn, HW, bc), w: (HW, bc), s/b: (1, bc) f32, o: (bn, bc).
    Multiply in the input dtype, accumulate the spatial reduction in f32.
    """
    prod = x_ref[...] * w_ref[...]                       # VPU (bf16 on v6e/v7x)
    acc = jnp.sum(prod, axis=1, dtype=jnp.float32)       # XLU reduce, f32 acc
    y = acc * s_ref[...] + b_ref[...]
    o_ref[...] = y.astype(o_ref.dtype)


def _gdconv_dw_kernel(*refs, K, P, D, H, Rb, rows_in, Wp, Wo,
                      has_top, has_bot, top_pad, bot_pad):
    """General KxK depthwise conv (stride 1, zero pad P) + folded BN.

    refs: x_main, [x_top_halo], [x_bot_halo], w, s, b, out, window_scratch.
      x_main : (1, rows_in, W, bc)   current row block of the image
      x_top  : (1, P, W, bc)         P rows above the block        (row-blocked, P>0)
      x_bot  : (1, D, W, bc)         D = K-1-P rows below the block (row-blocked, D>0)
      w      : (K, K, bc), s/b: (1, bc) f32
      out    : (1, Rb, Wo, bc)
      scratch: (Rb + K - 1, Wp, bc) in the INPUT dtype (halo + W padding window)
    """
    it = iter(refs)
    x_ref = next(it)
    top_ref = next(it) if has_top else None
    bot_ref = next(it) if has_bot else None
    w_ref = next(it)
    s_ref = next(it)
    b_ref = next(it)
    o_ref = next(it)
    xw_ref = next(it)

    W = x_ref.shape[2]
    bc = x_ref.shape[3]
    Wrows = Rb + K - 1
    r = pl.program_id(2)
    needs_mask = has_top          # only the row-blocked, P > 0 case needs masking

    zdt = xw_ref.dtype
    # --- zero ONLY the border strips of the window scratch (not the whole thing) ---
    if P > 0:
        xw_ref[:, 0:P, :] = jnp.zeros((Wrows, P, bc), zdt)
        xw_ref[:, P + W:Wp, :] = jnp.zeros((Wrows, Wp - P - W, bc), zdt)
    if top_pad > 0:               # single-block mode: P top padding rows
        xw_ref[0:top_pad, P:P + W, :] = jnp.zeros((top_pad, W, bc), zdt)
    if bot_pad > 0:               # single-block mode: P bottom padding rows
        xw_ref[Wrows - bot_pad:Wrows, P:P + W, :] = jnp.zeros((bot_pad, W, bc), zdt)

    # --- assemble the (Rb+K-1) input rows of the window (native dtype) ---
    off = top_pad
    if has_top:
        top = top_ref[0]
        top = jnp.where(r > 0, top, jnp.zeros_like(top))          # top zero-padding
        xw_ref[off:off + P, P:P + W, :] = top
        off += P
    main = x_ref[0]
    if needs_mask:
        g = r * Rb + lax.broadcasted_iota(jnp.int32, (rows_in, 1, 1), 0)
        main = jnp.where(g < H, main, jnp.zeros_like(main))       # ragged bottom rows
    xw_ref[off:off + rows_in, P:P + W, :] = main
    off += rows_in
    if has_bot:
        bot = bot_ref[0]
        if needs_mask:
            gb = (r + 1) * Rb + lax.broadcasted_iota(jnp.int32, (D, 1, 1), 0)
            bot = jnp.where(gb < H, bot, jnp.zeros_like(bot))     # bottom zero-padding
        xw_ref[off:off + D, P:P + W, :] = bot

    # --- K*K taps: kh = leading-axis slice (tile aligned), kw folded into the
    #     ref indexing; multiply in the input dtype, accumulate in f32. ---
    w = w_ref[...]
    acc = jnp.zeros((Rb, Wo, bc), jnp.float32)
    for kh in range(K):
        for kw in range(K):
            acc = acc + xw_ref[kh:kh + Rb, kw:kw + Wo, :] * w[kh, kw, :]

    y = acc * s_ref[...] + b_ref[...]
    o_ref[0] = y.astype(o_ref.dtype)


# ----------------------------- wrappers ------------------------------------

def _fold_bn(gamma, beta, mean, var, eps):
    scale = gamma / jnp.sqrt(var + eps)
    bias = beta - mean * scale
    return scale, bias


def gdconv_forward_nhwc(x_nhwc, w_torch, gamma, beta, mean, var, *,
                        kernel_size, padding, eps=1e-5):
    """GDConv forward with NHWC activations (channels -> TPU lanes)."""
    N, H, W, C = x_nhwc.shape
    K, P = int(kernel_size), int(padding)
    assert w_torch.shape == (C, 1, K, K), "depthwise weight must be (C,1,K,K)"
    # GDConv's Conv2d uses the defaults stride=1, dilation=1 (hard-wired here).
    Ho = H + 2 * P - K + 1
    Wo = W + 2 * P - K + 1
    assert Ho >= 1 and Wo >= 1, "kernel larger than (padded) input"

    isz = x_nhwc.dtype.itemsize
    scale, bias = _fold_bn(gamma, beta, mean, var, eps)
    s2 = scale.reshape(1, C).astype(jnp.float32)
    b2 = bias.reshape(1, C).astype(jnp.float32)
    # torch (C,1,K,K) -> (K,K,C): channels last so they sit on lanes.
    w_kkc = jnp.transpose(w_torch[:, 0, :, :], (1, 2, 0))

    if Ho == 1 and Wo == 1 and P == 0:
        # --- Global depthwise conv (the MobileFaceNet GDConv): per-channel
        #     weighted spatial reduction. ---
        HW = H * W
        x2 = x_nhwc.reshape(N, HW, C)              # trivial reshape, no transpose
        w2 = w_kkc.reshape(HW, C)

        # Lane-dense channel block that divides C (avoids ragged last block).
        bc = next((c for c in (512, 256, 128) if C % c == 0), C)
        # Batch block sized against an ~8 MiB per-buffer VMEM budget.
        bn = int(max(1, (8 * 2 ** 20) // max(1, HW * bc * isz)))
        bn = min(bn, N, 128)
        if N >= 8:
            bn = max(8, (bn // 8) * 8)             # sublane-friendly, >= 8
        else:
            bn = N                                 # block == full batch dim
        # v7x: a non-trivial workload should produce >= 2 tiles (2 TensorCores).
        if pl.cdiv(C, bc) * pl.cdiv(N, bn) == 1 and N * HW * C * isz >= (1 << 22):
            if bc % 256 == 0:
                bc //= 2
            elif N >= 16:
                bn = max(8, _round_up((N + 1) // 2, 8))

        grid = (pl.cdiv(C, bc), pl.cdiv(N, bn))    # C outer: w/s/b blocks stay resident
        est = (2 * bn * HW * bc * isz + 2 * HW * bc * isz
               + 2 * bn * bc * isz + 4 * bc * 8)
        out2 = pl.pallas_call(
            _gdconv_global_kernel,
            out_shape=jax.ShapeDtypeStruct((N, C), x_nhwc.dtype),
            grid=grid,
            in_specs=[
                pl.BlockSpec((bn, HW, bc), lambda c, n: (n, 0, c)),
                pl.BlockSpec((HW, bc), lambda c, n: (0, c)),
                pl.BlockSpec((1, bc), lambda c, n: (0, c)),
                pl.BlockSpec((1, bc), lambda c, n: (0, c)),
            ],
            out_specs=pl.BlockSpec((bn, bc), lambda c, n: (n, c)),
            compiler_params=pltpu.CompilerParams(
                dimension_semantics=("parallel", "parallel"),
                vmem_limit_bytes=int(min(max(2 * est, 32 * 2 ** 20),
                                         56 * 2 ** 20))),
        )(x2, w2, s2, b2)
        return out2.reshape(N, 1, 1, C)

    # --- General KxK depthwise conv, row-blocked with a (K-1)-row halo. ---
    # TODO(synk): for tiny channel counts (C << 128) pack (W, C) jointly onto
    # lanes to avoid masked sub-128 lane stores.
    D = K - 1 - P
    bc = next((c for c in (256, 128) if C % c == 0), C)

    # Row block must be a multiple of P and D so the halo BlockSpecs land on
    # exact block boundaries.
    m = 1
    if P > 0:
        m = m * P // math.gcd(m, P)
    if D > 0:
        m = m * D // math.gcd(m, D)
    rb = _round_up(32, m)
    single_block = (Ho <= rb) or (P > D)           # small images / unusual padding
    if single_block:
        Rb, rows_in = Ho, H
        has_top = has_bot = False
        top_pad = bot_pad = P                      # halo handled purely in scratch
    else:
        Rb, rows_in = rb, rb
        has_top, has_bot = (P > 0), (D > 0)
        top_pad = bot_pad = 0

    Wrows = Rb + K - 1
    Wp = W + 2 * P
    nrb = pl.cdiv(Ho, Rb)
    grid = (pl.cdiv(C, bc), N, nrb)                # C outer: weights stay resident

    in_specs = [pl.BlockSpec((1, rows_in, W, bc), lambda c, n, r: (n, r, 0, c))]
    operands = [x_nhwc]
    if has_top:
        tb = Rb // P
        in_specs.append(pl.BlockSpec(
            (1, P, W, bc),
            lambda c, n, r, tb=tb: (n, jnp.maximum(r * tb - 1, 0), 0, c)))
        operands.append(x_nhwc)
    if has_bot:
        db = Rb // D
        n_db = pl.cdiv(H, D)
        in_specs.append(pl.BlockSpec(
            (1, D, W, bc),
            lambda c, n, r, db=db, n_db=n_db:
                (n, jnp.minimum((r + 1) * db, n_db - 1), 0, c)))
        operands.append(x_nhwc)
    in_specs += [
        pl.BlockSpec((K, K, bc), lambda c, n, r: (0, 0, c)),
        pl.BlockSpec((1, bc), lambda c, n, r: (0, c)),
        pl.BlockSpec((1, bc), lambda c, n, r: (0, c)),
    ]
    operands += [w_kkc, s2, b2]

    kernel = functools.partial(
        _gdconv_dw_kernel, K=K, P=P, D=D, H=H, Rb=Rb, rows_in=rows_in,
        Wp=Wp, Wo=Wo, has_top=has_top, has_bot=has_bot,
        top_pad=top_pad, bot_pad=bot_pad)

    est = (2 * (rows_in + (P if has_top else 0) + (D if has_bot else 0))
           * W * bc * isz                           # input blocks, double-buffered
           + 2 * K * K * bc * isz + 4 * bc * 8      # weights, scale, bias
           + 2 * Rb * Wo * bc * isz                 # output block, double-buffered
           + Wrows * Wp * bc * isz                  # window scratch
           + Rb * Wo * bc * 4)                      # f32 accumulator value

    out = pl.pallas_call(
        kernel,
        out_shape=jax.ShapeDtypeStruct((N, Ho, Wo, C), x_nhwc.dtype),
        grid=grid,
        in_specs=in_specs,
        out_specs=pl.BlockSpec((1, Rb, Wo, bc), lambda c, n, r: (n, r, 0, c)),
        scratch_shapes=[pltpu.VMEM((Wrows, Wp, bc), x_nhwc.dtype)],
        compiler_params=pltpu.CompilerParams(
            dimension_semantics=("parallel", "parallel", "arbitrary"),
            vmem_limit_bytes=int(min(max(2 * est, 32 * 2 ** 20), 56 * 2 ** 20))),
    )(*operands)
    return out


def gdconv_forward(x_nchw, w_torch, gamma, beta, mean, var, *,
                   kernel_size, padding, eps=1e-5):
    """NCHW interface matching the PyTorch module.

    Prefer `gdconv_forward_nhwc` end-to-end; the two boundary transposes here
    are full HBM passes that a channels-last network does not need.
    """
    x_nhwc = jnp.transpose(x_nchw, (0, 2, 3, 1))
    y = gdconv_forward_nhwc(x_nhwc, w_torch, gamma, beta, mean, var,
                            kernel_size=kernel_size, padding=padding, eps=eps)
    return jnp.transpose(y, (0, 3, 1, 2))


# --------------------------- pure-JAX reference ----------------------------

def _ref_gdconv(x_nchw, w_torch, gamma, beta, mean, var, *,
                kernel_size, padding, eps=1e-5):
    N, C, H, W = x_nchw.shape
    K, P = int(kernel_size), int(padding)
    Ho = H + 2 * P - K + 1
    Wo = W + 2 * P - K + 1
    xp = jnp.pad(x_nchw, ((0, 0), (0, 0), (P, P), (P, P)))
    acc = jnp.zeros((N, C, Ho, Wo), jnp.float32)
    for kh in range(K):
        for kw in range(K):
            tap = w_torch[:, 0, kh, kw][None, :, None, None]
            acc = acc + xp[:, :, kh:kh + Ho, kw:kw + Wo] * tap
    scale = gamma / jnp.sqrt(var + eps)
    bias = beta - mean * scale
    return acc * scale[None, :, None, None] + bias[None, :, None, None]


def _make_bn(C, key):
    gamma = 1.0 + 0.05 * jnp.arange(C, dtype=jnp.float32)
    beta = 0.01 * jnp.arange(C, dtype=jnp.float32) - 0.02
    mean = 0.03 * jnp.arange(C, dtype=jnp.float32) - 0.01
    var = 1.0 + 0.02 * jnp.arange(C, dtype=jnp.float32)
    return gamma, beta, mean, var


# --------------------------------- main ------------------------------------

if __name__ == "__main__":
    key = jax.random.PRNGKey(0)
    ks = jax.random.split(key, 6)

    # Case 1: canonical GDConv (global depthwise conv): kernel == spatial,
    # padding 0, lane-dense channel count  -> global path.
    N, C, H, W = 2, 128, 7, 7
    K, P = 7, 0
    x = jax.random.normal(ks[0], (N, C, H, W), jnp.float32)
    w = 0.1 * jax.random.normal(ks[1], (C, 1, K, K), jnp.float32)
    g, b, m, v = _make_bn(C, None)
    out = gdconv_forward(x, w, g, b, m, v, kernel_size=K, padding=P)
    out = jax.block_until_ready(out)
    ref = _ref_gdconv(x, w, g, b, m, v, kernel_size=K, padding=P)
    np.testing.assert_allclose(np.asarray(out), np.asarray(ref),
                               rtol=1e-4, atol=1e-4)

    # Case 2: general 3x3 "same" depthwise conv, tiny channel count, small
    # image  -> single-block window path (scratch-handled halo).
    N2, C2, H2, W2 = 2, 4, 16, 16
    K2, P2 = 3, 1
    x2 = jax.random.normal(ks[2], (N2, C2, H2, W2), jnp.float32)
    w2 = 0.1 * jax.random.normal(ks[3], (C2, 1, K2, K2), jnp.float32)
    g2, b2, m2, v2 = _make_bn(C2, None)
    out2 = gdconv_forward(x2, w2, g2, b2, m2, v2, kernel_size=K2, padding=P2)
    out2 = jax.block_until_ready(out2)
    ref2 = _ref_gdconv(x2, w2, g2, b2, m2, v2, kernel_size=K2, padding=P2)
    np.testing.assert_allclose(np.asarray(out2), np.asarray(ref2),
                               rtol=1e-4, atol=1e-4)

    # Case 3: larger spatial map  -> row-blocked general path with halo specs
    # (exercises the VMEM-bounded tiling).
    N3, C3, H3, W3 = 1, 128, 48, 48
    K3, P3 = 3, 1
    x3 = jax.random.normal(ks[4], (N3, C3, H3, W3), jnp.float32)
    w3 = 0.1 * jax.random.normal(ks[5], (C3, 1, K3, K3), jnp.float32)
    g3, b3, m3, v3 = _make_bn(C3, None)
    out3 = gdconv_forward(x3, w3, g3, b3, m3, v3, kernel_size=K3, padding=P3)
    out3 = jax.block_until_ready(out3)
    ref3 = _ref_gdconv(x3, w3, g3, b3, m3, v3, kernel_size=K3, padding=P3)
    np.testing.assert_allclose(np.asarray(out3), np.asarray(ref3),
                               rtol=1e-4, atol=1e-4)

    print("KERNEL_OK")
</pallas_src>

<mosaic_0001>
module attributes {stable_mosaic.version = 11 : i64} {
  func.func @_gdconv_global_kernel(%arg0: i32, %arg1: i32, %arg2: memref<2x49x128xf32, #tpu.memory_space<vmem>>, %arg3: memref<49x128xf32, #tpu.memory_space<vmem>>, %arg4: memref<1x128xf32, #tpu.memory_space<vmem>>, %arg5: memref<1x128xf32, #tpu.memory_space<vmem>>, %arg6: memref<2x128xf32, #tpu.memory_space<vmem>>) attributes {dimension_semantics = [#tpu.dimension_semantics<parallel>, #tpu.dimension_semantics<parallel>], iteration_bounds = array<i64: 1, 1>, scalar_prefetch = 0 : i64, scratch_operands = 0 : i64, tpu.core_type = #tpu.core_type<tc>, window_params = [{transform_indices = @transform_0, window_bounds = array<i64: 2, 49, 128>}, {transform_indices = @transform_1, window_bounds = array<i64: 49, 128>}, {transform_indices = @transform_2, window_bounds = array<i64: 1, 128>}, {transform_indices = @transform_3, window_bounds = array<i64: 1, 128>}, {transform_indices = @transform_4, window_bounds = array<i64: 2, 128>}]} {
    %c0 = arith.constant 0 : index
    %c0_0 = arith.constant 0 : index
    %c0_1 = arith.constant 0 : index
    %0 = vector.load %arg2[%c0, %c0_0, %c0_1] : memref<2x49x128xf32, #tpu.memory_space<vmem>>, vector<2x49x128xf32>
    %c0_2 = arith.constant 0 : index
    %c0_3 = arith.constant 0 : index
    %1 = vector.load %arg3[%c0_2, %c0_3] : memref<49x128xf32, #tpu.memory_space<vmem>>, vector<49x128xf32>
    %2 = vector.shape_cast %1 : vector<49x128xf32> to vector<1x49x128xf32>
    %3 = vector.broadcast %2 : vector<1x49x128xf32> to vector<2x49x128xf32>
    %4 = arith.mulf %0, %3 : vector<2x49x128xf32>
    %cst = arith.constant dense<0.000000e+00> : vector<2x128xf32>
    %5 = vector.multi_reduction <add>, %4, %cst [1] : vector<2x49x128xf32> to vector<2x128xf32>
    %c0_4 = arith.constant 0 : index
    %c0_5 = arith.constant 0 : index
    %6 = vector.load %arg4[%c0_4, %c0_5] : memref<1x128xf32, #tpu.memory_space<vmem>>, vector<1x128xf32>
    %7 = vector.broadcast %6 : vector<1x128xf32> to vector<2x128xf32>
    %8 = arith.mulf %5, %7 : vector<2x128xf32>
    %c0_6 = arith.constant 0 : index
    %c0_7 = arith.constant 0 : index
    %9 = vector.load %arg5[%c0_6, %c0_7] : memref<1x128xf32, #tpu.memory_space<vmem>>, vector<1x128xf32>
    %10 = vector.broadcast %9 : vector<1x128xf32> to vector<2x128xf32>
    %11 = arith.addf %8, %10 : vector<2x128xf32>
    %c0_8 = arith.constant 0 : index
    %c0_9 = arith.constant 0 : index
    %12 = vector.load %arg6[%c0_8, %c0_9] : memref<2x128xf32, #tpu.memory_space<vmem>>, vector<2x128xf32>
    tpu.vector_store %arg6[%c0_8, %c0_9], %11 {strides = array<i32>} : memref<2x128xf32, #tpu.memory_space<vmem>>, vector<2x128xf32>,
    return
  }
  func.func @transform_0(%arg0: i32, %arg1: i32) -> (i32, i32, i32) {
    %c0_i32 = arith.constant 0 : i32
    %c0_i32_0 = arith.constant 0 : i32
    return %arg1, %c0_i32, %arg0 : i32, i32, i32
  }
  func.func @transform_1(%arg0: i32, %arg1: i32) -> (i32, i32) {
    %c0_i32 = arith.constant 0 : i32
    %c0_i32_0 = arith.constant 0 : i32
    return %c0_i32, %arg0 : i32, i32
  }
  func.func @transform_2(%arg0: i32, %arg1: i32) -> (i32, i32) {
    %c0_i32 = arith.constant 0 : i32
    %c0_i32_0 = arith.constant 0 : i32
    return %c0_i32, %arg0 : i32, i32
  }
  func.func @transform_3(%arg0: i32, %arg1: i32) -> (i32, i32) {
    %c0_i32 = arith.constant 0 : i32
    %c0_i32_0 = arith.constant 0 : i32
    return %c0_i32, %arg0 : i32, i32
  }
  func.func @transform_4(%arg0: i32, %arg1: i32) -> (i32, i32) {
    %c0_i32 = arith.constant 0 : i32
    return %arg1, %arg0 : i32, i32
  }
}

</mosaic_0001>

<llo_original>
// kernel: tpu_custom_call.1
$region0: #{tpu_custom_call.1}
  #allocation0 [shape = 'u32[]', space=smem, size = 0x4, offset = 0x4, fixed_abs, tag = 'smem constant byte address 0x4 - core index']
  #allocation1 [shape = 'u32[144,128]{1,0:T(1,128)}', space=vmem, size = 0x12000, scoped, tag = 'internal scratch']
  %s0 = inlined_call_operand.vmem [shape: f32[2,49,128], index: 0, kind: input, shape index: {}]
  %s1 = inlined_call_operand.vmem [shape: f32[49,128], index: 1, kind: input, shape index: {}]
  %s2 = inlined_call_operand.vmem [shape: f32[1,128], index: 2, kind: input, shape index: {}]
  %s3 = inlined_call_operand.vmem [shape: f32[1,128], index: 3, kind: input, shape index: {}]
  %s4 = inlined_call_operand.hbm [shape: f32[2,128], index: 4, kind: output, shape index: {}]
  %s5 = sld [smem:[#allocation0]]
  $region26: #{tpu_custom_call.1} parent=0
    _
  %s7 = ssub.s32 1, %s5
  %s8 = scalar_select 0, %s7, %s5
  $region1: #{tpu_custom_call.1} parent=0
    #allocation2 [shape = 'u8[1024]{0}', space=vmem, size = 0x400, scoped, tag = 'output window, operand 0, single buffered']
    #allocation3 [shape = 's32[1]{0}', space=sflag, size = 0x4, scoped, tag = 'scoped memory for tpu_custom_call.1']
    %9 = vsyncpa [#allocation3], 0
    // Predicated region
    $region2: #{tpu_custom_call.1} parent=1 // pred_check
      _
    $region3: #{tpu_custom_call.1} parent=1 // pred_check_branch
      %11 = sbr.rel (0) target = $region5
    $region4: #{tpu_custom_call.1} parent=1 // pred_region
      _
    $region5: #{tpu_custom_call.1} parent=1 // pred_fallthru
      _
    // Predicated region
    $region6: #{tpu_custom_call.1} parent=1 // pred_check
      _
    $region7: #{tpu_custom_call.1} parent=1 // pred_check_branch
      %13 = sbr.rel (0) target = $region9
    $region8: #{tpu_custom_call.1} parent=1 // pred_region
      _
    $region9: #{tpu_custom_call.1} parent=1 // pred_fallthru
      _
    // Predicated region
    $region10: #{tpu_custom_call.1} parent=1 // pred_check
      _
    $region11: #{tpu_custom_call.1} parent=1 // pred_check_branch
      %15 = sbr.rel (0) target = $region13
    $region12: #{tpu_custom_call.1} parent=1 // pred_region
      _
    $region13: #{tpu_custom_call.1} parent=1 // pred_fallthru
      _
    // Predicated region
    $region14: #{tpu_custom_call.1} parent=1 // pred_check
      _
    $region15: #{tpu_custom_call.1} parent=1 // pred_check_branch
      %17 = sbr.rel (0) target = $region17
    $region16: #{tpu_custom_call.1} parent=1 // pred_region
      _
    $region17: #{tpu_custom_call.1} parent=1 // pred_fallthru
      _
    %v18 = vld [vmem:[%s0] sm:$0xff]
    %v19 = vld [vmem:[%s0 + $0x8] sm:$0xff]
    %v20 = vld [vmem:[%s0 + $0x10] sm:$0xff]
    %v21 = vld [vmem:[%s0 + $0x18] sm:$0xff]
    %v22 = vld [vmem:[%s0 + $0x20] sm:$0xff]
    %v23 = vld [vmem:[%s0 + $0x28] sm:$0xff]
    %v24 = vld [vmem:[%s0 + $0x30] sm:$0x1]
    %v25 = vld [vmem:[%s0 + $0x38] sm:$0xff]
    %v26 = vld [vmem:[%s0 + $0x40] sm:$0xff]
    %v27 = vld [vmem:[%s0 + $0x48] sm:$0xff]
    %v28 = vld [vmem:[%s0 + $0x50] sm:$0xff]
    %v29 = vld [vmem:[%s0 + $0x58] sm:$0xff]
    %v30 = vld [vmem:[%s0 + $0x60] sm:$0xff]
    %v31 = vld [vmem:[%s0 + $0x68] sm:$0x1]
    %v32 = vld [vmem:[%s1] sm:$0xff]
    %v33 = vld [vmem:[%s1 + $0x8] sm:$0xff]
    %v34 = vld [vmem:[%s1 + $0x10] sm:$0xff]
    %v35 = vld [vmem:[%s1 + $0x18] sm:$0xff]
    %v36 = vld [vmem:[%s1 + $0x20] sm:$0xff]
    %v37 = vld [vmem:[%s1 + $0x28] sm:$0xff]
    %v38 = vld [vmem:[%s1 + $0x30] sm:$0x1]
    %v39 = vmul.f32 %v18, %v32
    %v40 = vmul.f32 %v19, %v33
    %v41 = vmul.f32 %v20, %v34
    %v42 = vmul.f32 %v21, %v35
    %v43 = vmul.f32 %v22, %v36
    %v44 = vmul.f32 %v23, %v37
    %v45 = vmul.f32 %v24, %v38
    %v46 = vmul.f32 %v25, %v32
    %v47 = vmul.f32 %v26, %v33
    %v48 = vmul.f32 %v27, %v34
    %v49 = vmul.f32 %v28, %v35
    %v50 = vmul.f32 %v29, %v36
    %v51 = vmul.f32 %v30, %v37
    %v52 = vmul.f32 %v31, %v38
    %v53 = vadd.f32 %v39, %v40
    %v54 = vadd.f32 %v53, %v41
    %v55 = vadd.f32 %v54, %v42
    %v56 = vadd.f32 %v55, %v43
    %v57 = vadd.f32 %v56, %v44
    %vm58 = vcmask 1040384
    %v59 = vsel %vm58, %v45, 0.0
    %v60 = vadd.f32 %v57, %v59
    %v61 = vrot.slane %v60, 4
    %v62 = vadd.f32 %v60, %v61
    %v63 = vrot.slane %v62, 2
    %v64 = vadd.f32 %v62, %v63
    %v65 = vrot.slane %v64, 1
    %v66 = vadd.f32 %v64, %v65
    %v67 = vadd.f32 %v46, %v47
    %v68 = vadd.f32 %v67, %v48
    %v69 = vadd.f32 %v68, %v49
    %v70 = vadd.f32 %v69, %v50
    %v71 = vadd.f32 %v70, %v51
    %v72 = vsel %vm58, %v52, 0.0
    %v73 = vadd.f32 %v71, %v72
    %v74 = vrot.slane %v73, 4
    %v75 = vadd.f32 %v73, %v74
    %v76 = vrot.slane %v75, 2
    %v77 = vadd.f32 %v75, %v76
    %v78 = vrot.slane %v77, 1
    %v79 = vadd.f32 %v77, %v78
    %v80 = vld [vmem:[%s2] sm:$0x1]
    %v82 = vlaneseq
    %v83 = vshrl.u32 %v82, 7
    %v84 = vsub.s32 0, %v83
    %v85 = vrot.slane %v80, %v84
    %v87 = vmul.f32 %v66, %v85
    %v88 = vmul.f32 %v79, %v85
    %v89 = vld [vmem:[%s3] sm:$0x1]
    %v91 = vlaneseq
    %v92 = vshrl.u32 %v91, 7
    %v93 = vsub.s32 0, %v92
    %v94 = vrot.slane %v89, %v93
    %v96 = vadd.f32 %v87, %v94
    %v97 = vadd.f32 %v88, %v94
    %v100 = vrot.slane %v97, 7
    %vm101 = vcmask 1041409
    %v102 = vsel %vm101, %v100, %v96
    %104 = vst [vmem:[#allocation2] sm:$0x3] %v102
    // Predicated region
    $region18: #{tpu_custom_call.1} parent=1 // pred_check
      _
    $region19: #{tpu_custom_call.1} parent=1 // pred_check_branch
      %106 = sbr.rel (0) target = $region21
    $region20: #{tpu_custom_call.1} parent=1 // pred_region
      %s108 = ssub.s32 32, 32
      %109 = vsyncadd [#allocation3], %s108
      %s111 = sshll.u32 [#allocation2], 4
      %s112 = int_to_ptr.vmem [resolvable:$true] %s111
      %114 = dma.vmem_to_hbm [thread:$0]  %s112, 32, %s4, [#allocation3]
    $region21: #{tpu_custom_call.1} parent=1 // pred_fallthru
      _
    // Predicated region
    $region22: #{tpu_custom_call.1} parent=1 // pred_check
      _
    $region23: #{tpu_custom_call.1} parent=1 // pred_check_branch
      %116 = sbr.rel (0) target = $region25
    $region24: #{tpu_custom_call.1} parent=1 // pred_region
      %117 = dma.done [#allocation3], 32
    $region25: #{tpu_custom_call.1} parent=1 // pred_fallthru
      _
    %118 = vsyncpa [#allocation3], 1

</llo_original>
